<compile_context>
chip_gen: v6e
topology: v6e:2x2x1
jax: 0.10.0
libtpu: 0.0.40
codegen_flags: <defaults>
</compile_context>

<pallas_src>
import jax
import jax.numpy as jnp
from jax.experimental import pallas as pl
from jax.experimental.pallas import tpu as pltpu

_LANE = 128


def _helicity_kernel(params_ref, x_ref, o_ref):
    # params_ref: SMEM (2,) -> [lambda_theta, norm]
    # x_ref:      VMEM (3, CHUNK) tile of the stacked input (native dtype)
    # o_ref:      VMEM (3, CHUNK) f32 output tile
    lam = params_ref[0]
    norm = params_ref[1]

    xv = x_ref[...].astype(jnp.float32)            # (3, CHUNK) upcast in-kernel
    c = xv[0:1, :]                                 # cosTheta row
    scale = norm * (1.0 + lam * c * c)             # norm * (1 + lambda * cosTheta^2)

    # Row 0 passes through; rows 1-2 are scaled.  Single full-tile, lane-dense store.
    o_ref[...] = jnp.concatenate([c, scale * xv[1:3, :]], axis=0)


def helicity1d_forward(x, lambda_theta, norm=None, learn_norm=True,
                       block_cols=65536, target_steps=8):
    """x: (3, N) array. Returns (3, N) float32 matching Helicity1d.forward."""
    x = jnp.asarray(x)
    assert x.ndim == 2 and x.shape[0] == 3, "expect stacked (3, N) input"
    N = x.shape[1]

    if learn_norm:
        if norm is None:
            raise ValueError("learn_norm=True requires a `norm` parameter")
        eff_norm = jnp.asarray(norm, jnp.float32)
    else:
        eff_norm = jnp.float32(1.0)
    params = jnp.stack([jnp.asarray(lambda_theta, jnp.float32), eff_norm])

    # Lane-aligned chunk, capped so the grid has >= target_steps steps (feeds both
    # TensorCores on v7x and amortizes per-step overhead everywhere).
    chunk = max(_LANE, pl.cdiv(pl.cdiv(N, target_steps), _LANE) * _LANE)
    chunk = min(block_cols, chunk)
    grid = (pl.cdiv(N, chunk),)                    # ragged last block is fine

    data_spec = pl.BlockSpec((3, chunk), lambda i: (0, i))

    cost = pl.CostEstimate(
        flops=7 * N,                               # c*c, *lam, +1, *norm, 2x scale-mul
        transcendentals=0,
        bytes_accessed=3 * N * x.dtype.itemsize + 3 * N * 4,
    )

    out = pl.pallas_call(
        _helicity_kernel,
        out_shape=jax.ShapeDtypeStruct((3, N), jnp.float32),
        grid=grid,
        in_specs=[
            pl.BlockSpec(memory_space=pltpu.MemorySpace.SMEM),  # [lambda_theta, norm]
            data_spec,                                          # stacked x (3, N)
        ],
        out_specs=data_spec,
        compiler_params=pltpu.CompilerParams(
            dimension_semantics=("parallel",),
            vmem_limit_bytes=32 * 1024 * 1024,
        ),
        cost_estimate=cost,
    )(params, x)
    return out


def helicity1d_reference(x, lambda_theta, norm=None, learn_norm=True):
    cos_theta = x[0].astype(jnp.float32)
    weight = 1.0 + jnp.asarray(lambda_theta, jnp.float32) * cos_theta ** 2
    if learn_norm:
        norm = jnp.asarray(norm, jnp.float32)
        return jnp.vstack([cos_theta, norm * weight * x[1], norm * weight * x[2]])
    return jnp.vstack([cos_theta, weight * x[1], weight * x[2]])


if __name__ == "__main__":
    key = jax.random.PRNGKey(0)

    # Deterministic parameter init matching torch.ones(()) in __init__.
    lambda_theta = jnp.float32(1.0)
    norm = jnp.float32(1.0)

    # --- learn_norm=True, N not lane-aligned (exercises ragged last block) ---
    N1 = 3000
    x1 = jax.random.normal(key, (3, N1), dtype=jnp.float32)
    out1 = jax.block_until_ready(
        helicity1d_forward(x1, lambda_theta, norm=norm, learn_norm=True))
    ref1 = helicity1d_reference(x1, lambda_theta, norm=norm, learn_norm=True)
    assert out1.shape == (3, N1)
    assert jnp.allclose(out1, ref1, atol=1e-6, rtol=1e-6)

    # --- learn_norm=False path, N an exact multiple of the chunk ---
    N2 = 2048
    x2 = jax.random.normal(jax.random.PRNGKey(1), (3, N2), dtype=jnp.float32)
    out2 = jax.block_until_ready(
        helicity1d_forward(x2, lambda_theta, learn_norm=False))
    ref2 = helicity1d_reference(x2, lambda_theta, learn_norm=False)
    assert out2.shape == (3, N2)
    assert jnp.allclose(out2, ref2, atol=1e-6, rtol=1e-6)

    # --- tiny N (< one lane) with non-trivial parameters ---
    N3 = 100
    x3 = jax.random.normal(jax.random.PRNGKey(2), (3, N3), dtype=jnp.float32)
    out3 = jax.block_until_ready(
        helicity1d_forward(x3, jnp.float32(0.37), norm=jnp.float32(1.8),
                           learn_norm=True))
    ref3 = helicity1d_reference(x3, jnp.float32(0.37), norm=jnp.float32(1.8),
                                learn_norm=True)
    assert out3.shape == (3, N3)
    assert jnp.allclose(out3, ref3, atol=1e-6, rtol=1e-6)

    print("KERNEL_OK")
</pallas_src>

<mosaic_0001>
module attributes {stable_mosaic.version = 11 : i64} {
  func.func @_helicity_kernel(%arg0: i32, %arg1: memref<2xf32, #tpu.memory_space<smem>>, %arg2: memref<3x384xf32, #tpu.memory_space<vmem>>, %arg3: memref<3x384xf32, #tpu.memory_space<vmem>>) attributes {dimension_semantics = [#tpu.dimension_semantics<parallel>], iteration_bounds = array<i64: 8>, scalar_prefetch = 0 : i64, scratch_operands = 0 : i64, tpu.core_type = #tpu.core_type<tc>, window_params = [{transform_indices = @transform_0, window_bounds = array<i64: 2>}, {transform_indices = @transform_1, window_bounds = array<i64: 3, 384>}, {transform_indices = @transform_2, window_bounds = array<i64: 3, 384>}]} {
    %c0 = arith.constant 0 : index
    %0 = memref.load %arg1[%c0] : memref<2xf32, #tpu.memory_space<smem>>
    %c1 = arith.constant 1 : index
    %1 = memref.load %arg1[%c1] : memref<2xf32, #tpu.memory_space<smem>>
    %c0_0 = arith.constant 0 : index
    %c0_1 = arith.constant 0 : index
    %2 = vector.load %arg2[%c0_0, %c0_1] : memref<3x384xf32, #tpu.memory_space<vmem>>, vector<3x384xf32>
    %3 = vector.extract_strided_slice %2 {offsets = [0, 0], sizes = [1, 384], strides = [1, 1]} : vector<3x384xf32> to vector<1x384xf32>
    %4 = vector.broadcast %0 : f32 to vector<1x384xf32>
    %5 = arith.mulf %4, %3 : vector<1x384xf32>
    %6 = arith.mulf %5, %3 : vector<1x384xf32>
    %cst = arith.constant 1.000000e+00 : f32
    %7 = vector.broadcast %cst : f32 to vector<1x384xf32>
    %8 = arith.addf %7, %6 : vector<1x384xf32>
    %9 = vector.broadcast %1 : f32 to vector<1x384xf32>
    %10 = arith.mulf %9, %8 : vector<1x384xf32>
    %11 = vector.extract_strided_slice %2 {offsets = [1, 0], sizes = [2, 384], strides = [1, 1]} : vector<3x384xf32> to vector<2x384xf32>
    %12 = vector.broadcast %10 : vector<1x384xf32> to vector<2x384xf32>
    %13 = arith.mulf %12, %11 : vector<2x384xf32>
    %14 = tpu.concatenate %3, %13 in 0 : vector<1x384xf32>, vector<2x384xf32> -> vector<3x384xf32>
    %c0_2 = arith.constant 0 : index
    %c0_3 = arith.constant 0 : index
    %15 = vector.load %arg3[%c0_2, %c0_3] : memref<3x384xf32, #tpu.memory_space<vmem>>, vector<3x384xf32>
    tpu.vector_store %arg3[%c0_2, %c0_3], %14 {strides = array<i32>} : memref<3x384xf32, #tpu.memory_space<vmem>>, vector<3x384xf32>,
    return
  }
  func.func @transform_0(%arg0: i32) -> i32 {
    %c0_i32 = arith.constant 0 : i32
    %c0_i32_0 = arith.constant 0 : i32
    return %c0_i32 : i32
  }
  func.func @transform_1(%arg0: i32) -> (i32, i32) {
    %c0_i32 = arith.constant 0 : i32
    %c0_i32_0 = arith.constant 0 : i32
    return %c0_i32, %arg0 : i32, i32
  }
  func.func @transform_2(%arg0: i32) -> (i32, i32) {
    %c0_i32 = arith.constant 0 : i32
    %c0_i32_0 = arith.constant 0 : i32
    return %c0_i32, %arg0 : i32, i32
  }
}

</mosaic_0001>

<llo_original>
// kernel: tpu_custom_call.1
$region0: #{tpu_custom_call.1}
  #allocation0 [shape = 'u32[]', space=smem, size = 0x4, offset = 0x4, fixed_abs, tag = 'smem constant byte address 0x4 - core index']
  #allocation1 [shape = 'u32[144,128]{1,0:T(1,128)}', space=vmem, size = 0x12000, scoped, tag = 'internal scratch']
  %s0 = inlined_call_operand.hbm [shape: f32[2], index: 0, kind: input, shape index: {}]
  %s1 = inlined_call_operand.hbm [shape: f32[3,3000], index: 1, kind: input, shape index: {}]
  %s2 = inlined_call_operand.hbm [shape: f32[3,3000], index: 2, kind: output, shape index: {}]
  %s3 = sld [smem:[#allocation0]]
  $region49: #{tpu_custom_call.1} parent=0
    _
  %s5 = ssub.s32 1, %s3
  %s6 = scalar_select 0, %s5, %s3
  $region1: #{tpu_custom_call.1} parent=0
    #allocation2 [shape = 'u8[512]{0}', space=smem, size = 0x200, scoped, tag = 'input window, operand 0, single buffered']
    #allocation3 [shape = 's32[2]{0}', space=sflag, size = 0x8, scoped, tag = 'scoped memory for tpu_custom_call.1']
    #allocation4 [shape = 's32[2]{0}', space=sflag, size = 0x8, scoped, tag = 'scoped memory for tpu_custom_call.1']
    #allocation5 [shape = 's32[2]{0}', space=sflag, size = 0x8, scoped, tag = 'scoped memory for tpu_custom_call.1']
    #allocation6 [shape = 'u8[12288]{0}', space=vmem, size = 0x3000, scoped, tag = 'input window, operand 1']
    #allocation7 [shape = 'u8[12288]{0}', space=vmem, size = 0x3000, scoped, tag = 'output window, operand 0']
    %7 = vsyncpa [#allocation5], 0
    %8 = vsyncpa [#allocation3], 0
    %s9 = scalar_lea.sflag [#allocation3], 1
    %10 = vsyncpa %s9, 0
    %11 = vsyncpa [#allocation4], 0
    %s12 = scalar_lea.sflag [#allocation4], 1
    %13 = vsyncpa %s12, 0
    loop: start=0, step=1, limit=10
    $region2: #{tpu_custom_call.1} parent=1 // loop_pre_header
      _
    $region3: #{tpu_custom_call.1} parent=1 // loop_header
      %s15 = sphi 0, %s19
      %p16 = scmp.ge.s32.totalorder %s15, 10
      %s23 = sphi 0, %s23
      %s25 = sphi 0, %s23
      %s26 = sphi 0, %s25
      %s40 = sphi 0, %s26
      %s46 = sphi 0, %s48
      %s49 = sphi 0, %s46
      %s50 = sphi 0, %s49
      %s66 = sphi 0, %s50
      %s72 = sphi 0, %s74
      %s75 = sphi 0, %s72
      %s76 = sphi 0, %s75
      %s92 = sphi 0, %s76
    $region4: #{tpu_custom_call.1} parent=1 // loop_header_branch
      %18 = sbr.rel (%p16) target = $region8
    $region5: #{tpu_custom_call.1} parent=1 // loop_body
      %s20 = ssub.s32 %s15, 1
      %s21 = ssub.s32 %s15, 2
      %s22 = sadd.s32 %s15, 1
      %s24 = sadd.s32 %s23, 1
      %p27 = scmp.eq.s32.totalorder %s15, 7
      %p28 = scmp.ne.s32.totalorder %s23, %s25
      %p29 = scmp.eq.s32.totalorder %s15, 0
      %p30 = por %p28, %p29
      %p31 = scmp.ne.s32.totalorder %s23, %s25
      %p32 = scmp.eq.s32.totalorder %s20, 7
      %p33 = por %p31, %p32
      %p34 = scmp.ne.s32.totalorder %s25, %s26
      %p35 = scmp.eq.s32.totalorder %s20, 0
      %p36 = por %p34, %p35
      %p37 = scmp.ne.s32.totalorder %s25, %s26
      %p38 = scmp.eq.s32.totalorder %s21, 7
      %p39 = por %p37, %p38
      %p41 = scmp.ne.s32.totalorder %s26, %s40
      %p42 = scmp.eq.s32.totalorder %s21, 0
      %p43 = por %p41, %p42
      %s44 = ssub.s32 %s15, %s22
      %p45 = scmp.eq.s32.totalorder %s44, 0
      %s47 = sadd.s32 %s46, 1
      %s48 = scalar_select %p45, %s46, %s47
      %p51 = pneg %p45
      %p52 = scmp.eq.s32.totalorder %s15, 7
      %p53 = por %p51, %p52
      %p54 = scmp.ne.s32.totalorder %s46, %s49
      %p55 = scmp.eq.s32.totalorder %s15, 0
      %p56 = por %p54, %p55
      %p57 = scmp.ne.s32.totalorder %s46, %s49
      %p58 = scmp.eq.s32.totalorder %s20, 7
      %p59 = por %p57, %p58
      %p60 = scmp.ne.s32.totalorder %s49, %s50
      %p61 = scmp.eq.s32.totalorder %s20, 0
      %p62 = por %p60, %p61
      %p63 = scmp.ne.s32.totalorder %s49, %s50
      %p64 = scmp.eq.s32.totalorder %s21, 7
      %p65 = por %p63, %p64
      %p67 = scmp.ne.s32.totalorder %s50, %s66
      %p68 = scmp.eq.s32.totalorder %s21, 0
      %p69 = por %p67, %p68
      %s70 = ssub.s32 %s15, %s22
      %p71 = scmp.eq.s32.totalorder %s70, 0
      %s73 = sadd.s32 %s72, 1
      %s74 = scalar_select %p71, %s72, %s73
      %p77 = pneg %p71
      %p78 = scmp.eq.s32.totalorder %s15, 7
      %p79 = por %p77, %p78
      %p80 = scmp.ne.s32.totalorder %s72, %s75
      %p81 = scmp.eq.s32.totalorder %s15, 0
      %p82 = por %p80, %p81
      %p83 = scmp.ne.s32.totalorder %s72, %s75
      %p84 = scmp.eq.s32.totalorder %s20, 7
      %p85 = por %p83, %p84
      %p86 = scmp.ne.s32.totalorder %s75, %s76
      %p87 = scmp.eq.s32.totalorder %s20, 0
      %p88 = por %p86, %p87
      %p89 = scmp.ne.s32.totalorder %s75, %s76
      %p90 = scmp.eq.s32.totalorder %s21, 7
      %p91 = por %p89, %p90
      %p93 = scmp.ne.s32.totalorder %s76, %s92
      %p94 = scmp.eq.s32.totalorder %s21, 0
      %p95 = por %p93, %p94
      %p96 = scmp.le.s32.totalorder 1, %s15
      %p97 = scmp.lt.s32.totalorder %s15, 9
      %p98 = pnand %p96, %p97
      %p99 = pneg %p98
      // Predicated region
      $region9: #{tpu_custom_call.1} parent=5 // pred_check
        _
      $region10: #{tpu_custom_call.1} parent=5 // pred_check_branch
        %101 = sbr.rel (%p98) target = $region12
      $region11: #{tpu_custom_call.1} parent=5 // pred_region
        %s102 = ssub.s32 %s15, 1
        // Predicated region
        $region13: #{tpu_custom_call.1} parent=11 // pred_check
          %p103 = pneg %p36
        $region14: #{tpu_custom_call.1} parent=11 // pred_check_branch
          %105 = sbr.rel (%p103) target = $region16
        $region15: #{tpu_custom_call.1} parent=11 // pred_region
          %s107 = ssub.s32 16, 16
          %108 = vsyncadd [#allocation5], %s107
          %111 = dma.hbm_to_smem %s0, 16, [#allocation2], [#allocation5]
        $region16: #{tpu_custom_call.1} parent=11 // pred_fallthru
          _
      $region12: #{tpu_custom_call.1} parent=5 // pred_fallthru
        _
      %p112 = scmp.lt.s32.totalorder %s15, 8
      // Predicated region
      $region17: #{tpu_custom_call.1} parent=5 // pred_check
        %p113 = pneg %p112
      $region18: #{tpu_custom_call.1} parent=5 // pred_check_branch
        %115 = sbr.rel (%p113) target = $region20
      $region19: #{tpu_custom_call.1} parent=5 // pred_region
        // Predicated region
        $region21: #{tpu_custom_call.1} parent=19 // pred_check
          %p116 = pneg %p56
        $region22: #{tpu_custom_call.1} parent=19 // pred_check_branch
          %118 = sbr.rel (%p116) target = $region24
        $region23: #{tpu_custom_call.1} parent=19 // pred_region
          %s119 = sand.u32 %s46, 1
          %s120 = scalar_lea.sflag [#allocation3], %s119
          %s121 = sand.u32 %s46, 1
          %s122 = smul.addr %s121, 12
          %s123 = scalar_lea.vmem [#allocation6], %s122
          %s124 = smul.u32 3, %s15
          %s126 = ssub.s32 192, 192
          %127 = vsyncadd %s120, %s126
          %s128 = smul.addr %s124, 64
          %s129 = scalar_lea.hbm %s1, %s128
          %s131 = sshll.u32 %s123, 4
          %s132 = int_to_ptr.vmem [resolvable:$true] %s131
          %134 = dma.hbm_to_vmem [thread:$0]  %s129, 192, %s132, %s120
        $region24: #{tpu_custom_call.1} parent=19 // pred_fallthru
          _
      $region20: #{tpu_custom_call.1} parent=5 // pred_fallthru
        _
      %p135 = scmp.le.s32.totalorder 1, %s15
      %p136 = scmp.lt.s32.totalorder %s15, 9
      %p137 = pnand %p135, %p136
      %p138 = pneg %p137
      // Predicated region
      $region25: #{tpu_custom_call.1} parent=5 // pred_check
        _
      $region26: #{tpu_custom_call.1} parent=5 // pred_check_branch
        %140 = sbr.rel (%p137) target = $region28
      $region27: #{tpu_custom_call.1} parent=5 // pred_region
        %s141 = ssub.s32 %s15, 1
        // Predicated region
        $region29: #{tpu_custom_call.1} parent=27 // pred_check
          %p142 = pneg %p36
        $region30: #{tpu_custom_call.1} parent=27 // pred_check_branch
          %144 = sbr.rel (%p142) target = $region32
        $region31: #{tpu_custom_call.1} parent=27 // pred_region
          %145 = dma.done [#allocation5], 16
        $region32: #{tpu_custom_call.1} parent=27 // pred_fallthru
          _
        %s146 = sand.u32 %s49, 1
        %s147 = scalar_lea.sflag [#allocation3], %s146
        %s148 = sand.u32 %s49, 1
        %s149 = smul.addr %s148, 12
        %s150 = scalar_lea.vmem [#allocation6], %s149
        // Predicated region
        $region33: #{tpu_custom_call.1} parent=27 // pred_check
          %p151 = pneg %p62
        $region34: #{tpu_custom_call.1} parent=27 // pred_check_branch
          %153 = sbr.rel (%p151) target = $region36
        $region35: #{tpu_custom_call.1} parent=27 // pred_region
          %154 = dma.done %s147, 192
        $region36: #{tpu_custom_call.1} parent=27 // pred_fallthru
          _
        %155 = sfence
        %p156 = pneg %p36
        %p157 = pneg %p33
        %s158 = sand.u32 %s49, 1
        %s159 = scalar_lea.sflag [#allocation3], %s158
        %s160 = sand.u32 %s49, 1
        %s161 = smul.addr %s160, 12
        %s162 = scalar_lea.vmem [#allocation6], %s161
        %p163 = pneg %p62
        %p164 = pneg %p59
        %p165 = pneg %p88
        %p166 = pneg %p85
        %s167 = sand.u32 %s75, 1
        %s168 = scalar_lea.sflag [#allocation4], %s167
        %s169 = sand.u32 %s75, 1
        %s170 = smul.addr %s169, 12
        %s171 = scalar_lea.vmem [#allocation7], %s170
        %s172 = smul.u32 3, %s20
        %s173 = smul.u32 3, %s20
        %s174 = sld [smem:[#allocation2]]
        %s175 = sld [smem:[#allocation2 + $0x1]]
        %v176 = vld [vmem:[%s150] sm:$0x77]
        %v177 = vld [vmem:[%s150 + $0x8] sm:$0x7]
        %v178 = vstv %s174
        %v179 = vmul.f32 %v178, %v176
        %v180 = vmul.f32 %v178, %v177
        %v181 = vmul.f32 %v179, %v176
        %v182 = vmul.f32 %v180, %v177
        %v183 = vadd.f32 %v181, 1.0
        %v184 = vadd.f32 %v182, 1.0
        %v185 = vstv %s175
        %v186 = vmul.f32 %v185, %v183
        %v187 = vmul.f32 %v185, %v184
        %v190 = vlaneseq
        %v191 = vshrl.u32 %v190, 7
        %v192 = vsub.s32 0, %v191
        %v193 = vrot.slane %v186, %v192
        %v194 = vlaneseq
        %v195 = vshrl.u32 %v194, 7
        %v196 = vsub.s32 4, %v195
        %v197 = vrot.slane %v186, %v196
        %v198 = vlaneseq
        %v199 = vshrl.u32 %v198, 7
        %v200 = vsub.s32 0, %v199
        %v201 = vrot.slane %v187, %v200
        %v205 = vlaneseq
        %v206 = vshrl.u32 %v205, 7
        %v207 = vsub.s32 0, %v206
        %v208 = vrot.slane %v193, %v207
        %v209 = vlaneseq
        %v210 = vshrl.u32 %v209, 7
        %v211 = vsub.s32 0, %v210
        %v212 = vrot.slane %v197, %v211
        %v213 = vlaneseq
        %v214 = vshrl.u32 %v213, 7
        %v215 = vsub.s32 0, %v214
        %v216 = vrot.slane %v201, %v215
        %v219 = vcombine.high %v176, %v176
        %v220 = vrot.slane %v176, 1
        %v221 = vrot.slane %v219, 1
        %v222 = vrot.slane %v177, 1
        %v226 = vmul.f32 %v208, %v220
        %v227 = vmul.f32 %v212, %v221
        %v228 = vmul.f32 %v216, %v222
        %v229 = vlaneseq
        %v230 = vshrl.u32 %v229, 7
        %v231 = vsub.s32 0, %v230
        %v232 = vrot.slane %v176, %v231
        %v233 = vlaneseq
        %v234 = vshrl.u32 %v233, 7
        %v235 = vsub.s32 4, %v234
        %v236 = vrot.slane %v176, %v235
        %v237 = vlaneseq
        %v238 = vshrl.u32 %v237, 7
        %v239 = vsub.s32 0, %v238
        %v240 = vrot.slane %v177, %v239
        %v247 = vrot.slane %v226, 7
        %v248 = vrot.slane %v227, 7
        %v249 = vrot.slane %v228, 7
        %vm253 = vcmask 1040384
        %v254 = vsel %vm253, %v232, %v247
        %v255 = vsel %vm253, %v236, %v248
        %v256 = vsel %vm253, %v240, %v249
        %v259 = vcombine.low %v254, %v255
        %261 = vst [vmem:[%s171] sm:$0x77] %v259
        %262 = vst [vmem:[%s171 + $0x8] sm:$0x7] %v256
        %s263 = sand.u32 %s75, 1
        %s264 = scalar_lea.sflag [#allocation4], %s263
        %s265 = sand.u32 %s75, 1
        %s266 = smul.addr %s265, 12
        %s267 = scalar_lea.vmem [#allocation7], %s266
        // Predicated region
        $region37: #{tpu_custom_call.1} parent=27 // pred_check
          %p268 = pneg %p85
        $region38: #{tpu_custom_call.1} parent=27 // pred_check_branch
          %270 = sbr.rel (%p268) target = $region40
        $region39: #{tpu_custom_call.1} parent=27 // pred_region
          %s271 = smul.u32 3, %s20
          %s273 = ssub.s32 192, 192
          %274 = vsyncadd %s264, %s273
          %s275 = smul.addr %s271, 64
          %s276 = scalar_lea.hbm %s2, %s275
          %s278 = sshll.u32 %s267, 4
          %s279 = int_to_ptr.vmem [resolvable:$true] %s278
          %281 = dma.vmem_to_hbm [thread:$0]  %s279, 192, %s276, %s264
        $region40: #{tpu_custom_call.1} parent=27 // pred_fallthru
          _
      $region28: #{tpu_custom_call.1} parent=5 // pred_fallthru
        _
      %p282 = scmp.le.s32.totalorder 2, %s15
      // Predicated region
      $region41: #{tpu_custom_call.1} parent=5 // pred_check
        %p283 = pneg %p282
      $region42: #{tpu_custom_call.1} parent=5 // pred_check_branch
        %285 = sbr.rel (%p283) target = $region44
      $region43: #{tpu_custom_call.1} parent=5 // pred_region
        %s286 = ssub.s32 %s15, 2
        // Predicated region
        $region45: #{tpu_custom_call.1} parent=43 // pred_check
          %p287 = pneg %p91
        $region46: #{tpu_custom_call.1} parent=43 // pred_check_branch
          %289 = sbr.rel (%p287) target = $region48
        $region47: #{tpu_custom_call.1} parent=43 // pred_region
          %s290 = sand.u32 %s76, 1
          %s291 = scalar_lea.sflag [#allocation4], %s290
          %s292 = sand.u32 %s76, 1
          %s293 = smul.addr %s292, 12
          %s294 = scalar_lea.vmem [#allocation7], %s293
          %295 = dma.done %s291, 192
        $region48: #{tpu_custom_call.1} parent=43 // pred_fallthru
          _
      $region44: #{tpu_custom_call.1} parent=5 // pred_fallthru
        _
    $region6: #{tpu_custom_call.1} parent=1 // loop_footer
      %s19 = sadd.s32 1, %s15
    $region7: #{tpu_custom_call.1} parent=1 // loop_footer_branch
      %14 = sbr.rel target = $region3
    $region8: #{tpu_custom_call.1} parent=1 // loop_exit
      _
    %296 = vsyncpa [#allocation3], 1
    %s297 = scalar_lea.sflag [#allocation3], 1
    %298 = vsyncpa %s297, 1
    %299 = vsyncpa [#allocation4], 1
    %s300 = scalar_lea.sflag [#allocation4], 1
    %301 = vsyncpa %s300, 1
    %302 = vsyncpa [#allocation5], 1
    %s303 = scalar_lea.sflag [#allocation5], 1
    %304 = vsyncpa %s303, 1

</llo_original>
